<compile_context>
chip_gen: v5e
topology: v5e:2x2
jax: 0.10.0
libtpu: 0.0.40
codegen_flags: <defaults>
</compile_context>

<pallas_src>
import functools
import math

import jax
import jax.numpy as jnp
from jax import lax
from jax.experimental import pallas as pl
from jax.experimental.pallas import tpu as pltpu


_SQRT_HALF = 1.0 / math.sqrt(2.0)


# ---------------------------------------------------------------------------
# In-kernel math helpers
# ---------------------------------------------------------------------------
def _erf(x):
    # Abramowitz & Stegun 7.1.26 rational approximation (max abs err ~1.5e-7).
    # Used instead of lax.erf so the kernel only needs exp/mul/add lowering.
    a1, a2, a3, a4, a5 = (0.254829592, -0.284496736, 1.421413741,
                          -1.453152027, 1.061405429)
    p = 0.3275911
    ax = jnp.abs(x)
    t = 1.0 / (1.0 + p * ax)
    poly = ((((a5 * t + a4) * t + a3) * t + a2) * t + a1) * t
    y = 1.0 - poly * jnp.exp(-ax * ax)
    return jnp.where(x >= 0, y, -y)


def _gelu(x):
    # gelu(x) = x * 0.5 * (1 + erf(x / sqrt(2)))  (matches the torch reference)
    return x * 0.5 * (1.0 + _erf(x * _SQRT_HALF))


def _layer_norm(h, gamma, beta, eps=1e-12):
    u = jnp.mean(h, axis=-1, keepdims=True)
    d = h - u
    s = jnp.mean(d * d, axis=-1, keepdims=True)
    return gamma * (d * lax.rsqrt(s + eps)) + beta


# ---------------------------------------------------------------------------
# Kernels
# ---------------------------------------------------------------------------
def _dense_kernel(x_ref, w_ref, b_ref, o_ref):
    # o = x @ W^T + b ; W is [out, in] (PyTorch nn.Linear layout, no transpose).
    h = lax.dot_general(x_ref[...], w_ref[...],
                        dimension_numbers=(((1,), (1,)), ((), ())),
                        preferred_element_type=jnp.float32)
    h = h + b_ref[...].astype(jnp.float32)
    o_ref[...] = h.astype(o_ref.dtype)


def _dense_gelu_kernel(x_ref, w_ref, b_ref, o_ref):
    # o = gelu(x @ W^T + b)  (BertIntermediate)
    h = lax.dot_general(x_ref[...], w_ref[...],
                        dimension_numbers=(((1,), (1,)), ((), ())),
                        preferred_element_type=jnp.float32)
    h = h + b_ref[...].astype(jnp.float32)
    o_ref[...] = _gelu(h).astype(o_ref.dtype)


def _dense_residual_ln_kernel(x_ref, res_ref, w_ref, b_ref, g_ref, be_ref, o_ref):
    # o = LayerNorm((x @ W^T + b) + residual)   (BertSelfOutput / BertOutput;
    # dropout is identity at inference)
    h = lax.dot_general(x_ref[...], w_ref[...],
                        dimension_numbers=(((1,), (1,)), ((), ())),
                        preferred_element_type=jnp.float32)
    h = h + b_ref[...].astype(jnp.float32) + res_ref[...].astype(jnp.float32)
    out = _layer_norm(h, g_ref[...].astype(jnp.float32),
                      be_ref[...].astype(jnp.float32))
    o_ref[...] = out.astype(o_ref.dtype)


def _attention_kernel(q_ref, k_ref, v_ref, mask_ref, o_ref, *, scale):
    # One (batch, head) at a time:  scores -> softmax -> context.
    q = q_ref[0, 0]                              # (S, dh)
    k = k_ref[0, 0]                              # (S, dh)
    v = v_ref[0, 0]                              # (S, dh)
    scores = lax.dot_general(q, k,
                             dimension_numbers=(((1,), (1,)), ((), ())),
                             preferred_element_type=jnp.float32) * scale
    scores = scores + mask_ref[0].astype(jnp.float32)        # (S,S) + (1,S)
    m = jnp.max(scores, axis=-1, keepdims=True)
    e = jnp.exp(scores - m)
    denom = jnp.sum(e, axis=-1, keepdims=True)
    probs = e * (1.0 / denom)
    # attention-probability dropout is identity at inference
    ctx = jnp.dot(probs.astype(v.dtype), v, preferred_element_type=jnp.float32)
    o_ref[0, 0] = ctx.astype(o_ref.dtype)


# ---------------------------------------------------------------------------
# pallas_call wrappers
# ---------------------------------------------------------------------------
def _row_tile(m):
    # MXU-sized row tiles; keep >=2 grid steps when possible (v7x megacore).
    for tm in (512, 256, 128):
        if m >= 2 * tm:
            return tm
    if m >= 128:
        return 128
    return max(8, ((m + 7) // 8) * 8)


def _pad_rows(x2, tm):
    m = x2.shape[0]
    m_pad = ((m + tm - 1) // tm) * tm
    if m_pad != m:
        x2 = jnp.pad(x2, ((0, m_pad - m), (0, 0)))
    return x2, m_pad


def _dense_act(x2, weight, bias, activation="none"):
    m, k = x2.shape
    n = weight.shape[0]
    tm = _row_tile(m)
    x_p, m_pad = _pad_rows(x2, tm)
    kernel = _dense_gelu_kernel if activation == "gelu" else _dense_kernel
    out = pl.pallas_call(
        kernel,
        out_shape=jax.ShapeDtypeStruct((m_pad, n), x2.dtype),
        grid_spec=pltpu.PrefetchScalarGridSpec(
            num_scalar_prefetch=0,
            grid=(m_pad // tm,),
            in_specs=[
                pl.BlockSpec((tm, k), lambda i: (i, 0)),
                pl.BlockSpec((n, k), lambda i: (0, 0)),
                pl.BlockSpec((1, n), lambda i: (0, 0)),
            ],
            out_specs=pl.BlockSpec((tm, n), lambda i: (i, 0)),
        ),
        compiler_params=pltpu.CompilerParams(dimension_semantics=("parallel",)),
    )(x_p, weight, bias.reshape(1, n))
    return out[:m]


def _dense_residual_ln(x2, residual2, weight, bias, gamma, beta):
    m, k = x2.shape
    n = weight.shape[0]
    tm = _row_tile(m)
    x_p, m_pad = _pad_rows(x2, tm)
    r_p, _ = _pad_rows(residual2, tm)
    out = pl.pallas_call(
        _dense_residual_ln_kernel,
        out_shape=jax.ShapeDtypeStruct((m_pad, n), x2.dtype),
        grid_spec=pltpu.PrefetchScalarGridSpec(
            num_scalar_prefetch=0,
            grid=(m_pad // tm,),
            in_specs=[
                pl.BlockSpec((tm, k), lambda i: (i, 0)),
                pl.BlockSpec((tm, n), lambda i: (i, 0)),
                pl.BlockSpec((n, k), lambda i: (0, 0)),
                pl.BlockSpec((1, n), lambda i: (0, 0)),
                pl.BlockSpec((1, n), lambda i: (0, 0)),
                pl.BlockSpec((1, n), lambda i: (0, 0)),
            ],
            out_specs=pl.BlockSpec((tm, n), lambda i: (i, 0)),
        ),
        compiler_params=pltpu.CompilerParams(dimension_semantics=("parallel",)),
    )(x_p, r_p, weight, bias.reshape(1, n), gamma.reshape(1, n), beta.reshape(1, n))
    return out[:m]


def _self_attention(q4, k4, v4, mask3, scale):
    # q4/k4/v4: (B, nH, S, dh); mask3: (B, 1, S) additive mask
    B, nH, S, dh = q4.shape
    kern = functools.partial(_attention_kernel, scale=scale)
    head_spec = pl.BlockSpec((1, 1, S, dh), lambda b, h: (b, h, 0, 0))
    return pl.pallas_call(
        kern,
        out_shape=jax.ShapeDtypeStruct((B, nH, S, dh), q4.dtype),
        grid_spec=pltpu.PrefetchScalarGridSpec(
            num_scalar_prefetch=0,
            grid=(B, nH),
            in_specs=[head_spec, head_spec, head_spec,
                      pl.BlockSpec((1, 1, S), lambda b, h: (b, 0, 0))],
            out_specs=head_spec,
        ),
        compiler_params=pltpu.CompilerParams(
            dimension_semantics=("parallel", "parallel")),
    )(q4, k4, v4, mask3)


# ---------------------------------------------------------------------------
# BertLayer / BertEncoder forward
# ---------------------------------------------------------------------------
def bert_layer_forward(hidden, mask3, p, num_heads):
    B, S, H = hidden.shape
    M = B * S
    dh = H // num_heads
    x2 = hidden.reshape(M, H)

    # Fused QKV projection: one row-tiled MXU pass over the [3H, H] weight.
    qkv_w = jnp.concatenate([p["q_w"], p["k_w"], p["v_w"]], axis=0)     # (3H, H)
    qkv_b = jnp.concatenate([p["q_b"], p["k_b"], p["v_b"]], axis=0)     # (3H,)
    qkv = _dense_act(x2, qkv_w, qkv_b)                                  # (M, 3H)

    def _heads(t):
        return t.reshape(B, S, num_heads, dh).transpose(0, 2, 1, 3)     # (B,nH,S,dh)

    q4 = _heads(qkv[:, 0 * H:1 * H])
    k4 = _heads(qkv[:, 1 * H:2 * H])
    v4 = _heads(qkv[:, 2 * H:3 * H])

    ctx = _self_attention(q4, k4, v4, mask3, 1.0 / math.sqrt(dh))       # (B,nH,S,dh)
    ctx2 = ctx.transpose(0, 2, 1, 3).reshape(M, H)

    # BertSelfOutput: dense + dropout(id) + LayerNorm(x + residual)
    attn_out = _dense_residual_ln(ctx2, x2, p["ao_w"], p["ao_b"],
                                  p["ao_g"], p["ao_be"])
    # BertIntermediate: dense + gelu
    inter = _dense_act(attn_out, p["i_w"], p["i_b"], activation="gelu")
    # BertOutput: dense + dropout(id) + LayerNorm(x + residual)
    out = _dense_residual_ln(inter, attn_out, p["o_w"], p["o_b"],
                             p["o_g"], p["o_be"])
    return out.reshape(B, S, H)


def bert_encoder_forward(hidden_states, attention_mask, layer_params, num_heads,
                         output_all_encoded_layers=True):
    """hidden_states: [B, S, H]; attention_mask: additive mask [B, 1, 1, S]."""
    B, S, _ = hidden_states.shape
    mask3 = attention_mask.reshape(B, 1, S).astype(hidden_states.dtype)
    all_encoder_layers = []
    h = hidden_states
    for p in layer_params:
        h = bert_layer_forward(h, mask3, p, num_heads)
        if output_all_encoded_layers:
            all_encoder_layers.append(h)
    if not output_all_encoded_layers:
        all_encoder_layers.append(h)
    return all_encoder_layers


# ---------------------------------------------------------------------------
# Pure-JAX reference (mirrors the torch module, eval mode)
# ---------------------------------------------------------------------------
def _reference_encoder(hidden_states, attention_mask, layer_params, num_heads):
    def ln(x, g, b, eps=1e-12):
        u = x.mean(-1, keepdims=True)
        s = ((x - u) ** 2).mean(-1, keepdims=True)
        return g * ((x - u) / jnp.sqrt(s + eps)) + b

    def gelu_ref(x):
        return x * 0.5 * (1.0 + jax.scipy.special.erf(x / jnp.sqrt(2.0)))

    B, S, H = hidden_states.shape
    dh = H // num_heads
    h = hidden_states
    outs = []
    for p in layer_params:
        q = h @ p["q_w"].T + p["q_b"]
        k = h @ p["k_w"].T + p["k_b"]
        v = h @ p["v_w"].T + p["v_b"]

        def tr(t):
            return t.reshape(B, S, num_heads, dh).transpose(0, 2, 1, 3)

        q, k, v = tr(q), tr(k), tr(v)
        scores = jnp.einsum("bhqd,bhkd->bhqk", q, k) / math.sqrt(dh)
        scores = scores + attention_mask
        probs = jax.nn.softmax(scores, axis=-1)
        ctx = jnp.einsum("bhqk,bhkd->bhqd", probs, v)
        ctx = ctx.transpose(0, 2, 1, 3).reshape(B, S, H)
        attn_out = ln(ctx @ p["ao_w"].T + p["ao_b"] + h, p["ao_g"], p["ao_be"])
        inter = gelu_ref(attn_out @ p["i_w"].T + p["i_b"])
        h = ln(inter @ p["o_w"].T + p["o_b"] + attn_out, p["o_g"], p["o_be"])
        outs.append(h)
    return outs


# ---------------------------------------------------------------------------
# Test
# ---------------------------------------------------------------------------
if __name__ == "__main__":
    B, S, H, NH, I, L = 2, 8, 32, 4, 64, 2          # batch, seq, hidden, heads, ffn, layers

    key = jax.random.PRNGKey(0)
    key, kx = jax.random.split(key)
    x = jax.random.normal(kx, (B, S, H), dtype=jnp.float32)

    # additive attention mask (HF-style extended mask); mask out last 2 keys of batch 1
    valid = jnp.ones((B, S), dtype=jnp.float32).at[1, -2:].set(0.0)
    attention_mask = ((1.0 - valid) * -10000.0)[:, None, None, :]       # (B,1,1,S)

    def _lin(k, out_dim, in_dim):
        kw, kb = jax.random.split(k)
        return (jax.random.normal(kw, (out_dim, in_dim), jnp.float32) * 0.02,
                jax.random.normal(kb, (out_dim,), jnp.float32) * 0.02)

    layer_params = []
    for _ in range(L):
        key, *ks = jax.random.split(key, 7)
        qw, qb = _lin(ks[0], H, H)
        kw_, kb_ = _lin(ks[1], H, H)
        vw, vb = _lin(ks[2], H, H)
        aow, aob = _lin(ks[3], H, H)
        iw, ib = _lin(ks[4], I, H)
        ow, ob = _lin(ks[5], H, I)
        layer_params.append(dict(
            q_w=qw, q_b=qb, k_w=kw_, k_b=kb_, v_w=vw, v_b=vb,
            ao_w=aow, ao_b=aob, ao_g=jnp.ones((H,), jnp.float32),
            ao_be=jnp.zeros((H,), jnp.float32),
            i_w=iw, i_b=ib,
            o_w=ow, o_b=ob, o_g=jnp.ones((H,), jnp.float32),
            o_be=jnp.zeros((H,), jnp.float32),
        ))

    outs = bert_encoder_forward(x, attention_mask, layer_params, NH,
                                output_all_encoded_layers=True)
    outs = jax.block_until_ready(outs)

    refs = _reference_encoder(x, attention_mask, layer_params, NH)
    assert len(outs) == L
    for o, r in zip(outs, refs):
        assert o.shape == (B, S, H)
        assert jnp.allclose(o, r, atol=1e-4, rtol=1e-4), "mismatch vs reference"

    print("KERNEL_OK")
</pallas_src>

<mosaic_0001>
module attributes {stable_mosaic.version = 11 : i64} {
  func.func @_dense_kernel(%arg0: i32, %arg1: memref<16x32xf32, #tpu.memory_space<vmem>>, %arg2: memref<96x32xf32, #tpu.memory_space<vmem>>, %arg3: memref<1x96xf32, #tpu.memory_space<vmem>>, %arg4: memref<16x96xf32, #tpu.memory_space<vmem>>) attributes {dimension_semantics = [#tpu.dimension_semantics<parallel>], iteration_bounds = array<i64: 1>, scalar_prefetch = 0 : i64, scratch_operands = 0 : i64, tpu.core_type = #tpu.core_type<tc>, window_params = [{transform_indices = @transform_0, window_bounds = array<i64: 16, 32>}, {pipeline_mode = #tpu.pipeline_mode<synchronous>, transform_indices = @transform_1, window_bounds = array<i64: 96, 32>}, {pipeline_mode = #tpu.pipeline_mode<synchronous>, transform_indices = @transform_2, window_bounds = array<i64: 1, 96>}, {transform_indices = @transform_3, window_bounds = array<i64: 16, 96>}]} {
    %c0 = arith.constant 0 : index
    %c0_0 = arith.constant 0 : index
    %0 = vector.load %arg1[%c0, %c0_0] : memref<16x32xf32, #tpu.memory_space<vmem>>, vector<16x32xf32>
    %c0_1 = arith.constant 0 : index
    %c0_2 = arith.constant 0 : index
    %1 = vector.load %arg2[%c0_1, %c0_2] : memref<96x32xf32, #tpu.memory_space<vmem>>, vector<96x32xf32>
    %cst = arith.constant dense<0.000000e+00> : vector<16x96xf32>
    %2 = tpu.matmul %0, %1, %cst {dimension_numbers = #tpu.dot_dimension_numbers<[1], [1], [0], [0], [0, 0, 1, 0], [], []>} : vector<16x32xf32>, vector<96x32xf32>, vector<16x96xf32> -> vector<16x96xf32>
    %c0_3 = arith.constant 0 : index
    %c0_4 = arith.constant 0 : index
    %3 = vector.load %arg3[%c0_3, %c0_4] : memref<1x96xf32, #tpu.memory_space<vmem>>, vector<1x96xf32>
    %4 = vector.broadcast %3 : vector<1x96xf32> to vector<16x96xf32>
    %5 = arith.addf %2, %4 : vector<16x96xf32>
    %c0_5 = arith.constant 0 : index
    %c0_6 = arith.constant 0 : index
    %6 = vector.load %arg4[%c0_5, %c0_6] : memref<16x96xf32, #tpu.memory_space<vmem>>, vector<16x96xf32>
    tpu.vector_store %arg4[%c0_5, %c0_6], %5 {strides = array<i32>} : memref<16x96xf32, #tpu.memory_space<vmem>>, vector<16x96xf32>,
    return
  }
  func.func @transform_0(%arg0: i32) -> (i32, i32) {
    %c0_i32 = arith.constant 0 : i32
    %c0_i32_0 = arith.constant 0 : i32
    return %arg0, %c0_i32 : i32, i32
  }
  func.func @transform_1(%arg0: i32) -> (i32, i32) {
    %c0_i32 = arith.constant 0 : i32
    %c0_i32_0 = arith.constant 0 : i32
    %c0_i32_1 = arith.constant 0 : i32
    return %c0_i32, %c0_i32_0 : i32, i32
  }
  func.func @transform_2(%arg0: i32) -> (i32, i32) {
    %c0_i32 = arith.constant 0 : i32
    %c0_i32_0 = arith.constant 0 : i32
    %c0_i32_1 = arith.constant 0 : i32
    return %c0_i32, %c0_i32_0 : i32, i32
  }
  func.func @transform_3(%arg0: i32) -> (i32, i32) {
    %c0_i32 = arith.constant 0 : i32
    %c0_i32_0 = arith.constant 0 : i32
    return %arg0, %c0_i32 : i32, i32
  }
}

</mosaic_0001>

<llo_original>
// kernel: tpu_custom_call.1
$region0: #{tpu_custom_call.1}
  #allocation0 [shape = 'u32[]', space=smem, size = 0x4, offset = 0x4, fixed_abs, tag = 'smem constant byte address 0x4 - core index']
  #allocation1 [shape = 'u32[72,128]{1,0:T(1,128)}', space=vmem, size = 0x9000, scoped, tag = 'internal scratch']
  %s0 = inlined_call_operand.vmem [shape: f32[16,32], index: 0, kind: input, shape index: {}]
  %s1 = inlined_call_operand.vmem [shape: f32[96,32], index: 1, kind: input, shape index: {}]
  %s2 = inlined_call_operand.vmem [shape: f32[1,96], index: 2, kind: input, shape index: {}]
  %s3 = inlined_call_operand.hbm [shape: f32[16,96], index: 3, kind: output, shape index: {}]
  %s4 = sld [smem:[#allocation0]]
  $region22: #{tpu_custom_call.1} parent=0
    _
  %s6 = ssub.s32 1, %s4
  %s7 = scalar_select 0, %s6, %s4
  $region1: #{tpu_custom_call.1} parent=0
    #allocation2 [shape = 'u8[8192]{0}', space=vmem, size = 0x2000, scoped, tag = 'output window, operand 0, single buffered']
    #allocation3 [shape = 's32[1]{0}', space=sflag, size = 0x4, scoped, tag = 'scoped memory for tpu_custom_call.1']
    %8 = vsyncpa [#allocation3], 0
    // Predicated region
    $region2: #{tpu_custom_call.1} parent=1 // pred_check
      _
    $region3: #{tpu_custom_call.1} parent=1 // pred_check_branch
      %10 = sbr.rel (0) target = $region5
    $region4: #{tpu_custom_call.1} parent=1 // pred_region
      _
    $region5: #{tpu_custom_call.1} parent=1 // pred_fallthru
      _
    // Predicated region
    $region6: #{tpu_custom_call.1} parent=1 // pred_check
      _
    $region7: #{tpu_custom_call.1} parent=1 // pred_check_branch
      %12 = sbr.rel (0) target = $region9
    $region8: #{tpu_custom_call.1} parent=1 // pred_region
      _
    $region9: #{tpu_custom_call.1} parent=1 // pred_fallthru
      _
    // Predicated region
    $region10: #{tpu_custom_call.1} parent=1 // pred_check
      _
    $region11: #{tpu_custom_call.1} parent=1 // pred_check_branch
      %14 = sbr.rel (0) target = $region13
    $region12: #{tpu_custom_call.1} parent=1 // pred_region
      _
    $region13: #{tpu_custom_call.1} parent=1 // pred_fallthru
      _
    %v15 = vld [vmem:[%s0] sm:$0xff]
    %v16 = vld [vmem:[%s0 + $0x8] sm:$0xff]
    %v17 = vld [vmem:[%s1] sm:$0xff]
    %v18 = vld [vmem:[%s1 + $0x8] sm:$0xff]
    %v19 = vld [vmem:[%s1 + $0x10] sm:$0xff]
    %v20 = vld [vmem:[%s1 + $0x18] sm:$0xff]
    %v21 = vld [vmem:[%s1 + $0x20] sm:$0xff]
    %v22 = vld [vmem:[%s1 + $0x28] sm:$0xff]
    %v23 = vld [vmem:[%s1 + $0x30] sm:$0xff]
    %v24 = vld [vmem:[%s1 + $0x38] sm:$0xff]
    %v25 = vld [vmem:[%s1 + $0x40] sm:$0xff]
    %v26 = vld [vmem:[%s1 + $0x48] sm:$0xff]
    %v27 = vld [vmem:[%s1 + $0x50] sm:$0xff]
    %v28 = vld [vmem:[%s1 + $0x58] sm:$0xff]
    %v29 = vld [vmem:[%s2] sm:$0x1]
    %v31 = vperm.slane %v29, 0
    %vm33 = vcmask 261120
    %v35 = vsel %vm33, %v15, 0
    %v38 = vsel %vm33, %v16, 0
    %v41 = vsel %vm33, %v17, 0
    %v44 = vsel %vm33, %v18, 0
    %v47 = vsel %vm33, %v19, 0
    %v50 = vsel %vm33, %v20, 0
    %v53 = vsel %vm33, %v21, 0
    %v56 = vsel %vm33, %v22, 0
    %v59 = vsel %vm33, %v23, 0
    %v62 = vsel %vm33, %v24, 0
    %v65 = vsel %vm33, %v25, 0
    %v68 = vsel %vm33, %v26, 0
    %v71 = vsel %vm33, %v27, 0
    %v74 = vsel %vm33, %v28, 0
    %76 = vmatpush.xpose.msra.mxu0 0.0
    %77 = vmatpush.xpose.msra.mxu0 0.0
    %78 = vmatpush.xpose.msra.mxu0 0.0
    %79 = vmatpush.xpose.msra.mxu0 0.0
    %80 = vmatpush.xpose.msra.mxu0 %v74
    %81 = vmatpush.xpose.msra.mxu0 %v71
    %82 = vmatpush.xpose.msra.mxu0 %v68
    %83 = vmatpush.xpose.msra.mxu0 %v65
    %84 = vmatpush.xpose.msra.mxu0 %v62
    %85 = vmatpush.xpose.msra.mxu0 %v59
    %86 = vmatpush.xpose.msra.mxu0 %v56
    %87 = vmatpush.xpose.msra.mxu0 %v53
    %88 = vmatpush.xpose.msra.mxu0 %v50
    %89 = vmatpush.xpose.msra.mxu0 %v47
    %90 = vmatpush.xpose.msra.mxu0 %v44
    %91 = vmatpush.xpose.msra.mxu0 %v41
    %92 = vmatmul.f32.gmra.mxu0 %v35
    %v93 = vpop.f32.mrf.mxu0
    %v94 = vadd.f32 %v31, %v93
    %95 = vmatmul.f32.gmra.mxu0 %v38
    %v96 = vpop.f32.mrf.mxu0
    %v97 = vadd.f32 %v31, %v96
    %98 = vdwg.mxu0
    %vm99 = vcmask 785408
    %100 = vst.msk [vmem:[#allocation2] sm:$0xff] %vm99, %v94
    %101 = vst.msk [vmem:[#allocation2 + $0x8] sm:$0xff] %vm99, %v97
    // Predicated region
    $region14: #{tpu_custom_call.1} parent=1 // pred_check
      _
    $region15: #{tpu_custom_call.1} parent=1 // pred_check_branch
      %103 = sbr.rel (0) target = $region17
    $region16: #{tpu_custom_call.1} parent=1 // pred_region
      %105 = vsyncadd [#allocation3], 0
      %s106 = sshll.u32 [#allocation2], 4
      %s107 = int_to_ptr.vmem [resolvable:$true] %s106
      %s108 = sshll.u32 %s3, 4
      %s109 = int_to_ptr.hbm [resolvable:$true] %s108
      %114 = dma.vmem_to_hbm [thread:$0]  %s107, 256, %s109, [#allocation3], 128, 128, 8
    $region17: #{tpu_custom_call.1} parent=1 // pred_fallthru
      _
    // Predicated region
    $region18: #{tpu_custom_call.1} parent=1 // pred_check
      _
    $region19: #{tpu_custom_call.1} parent=1 // pred_check_branch
      %116 = sbr.rel (0) target = $region21
    $region20: #{tpu_custom_call.1} parent=1 // pred_region
      %118 = dma.done [#allocation3], 256
    $region21: #{tpu_custom_call.1} parent=1 // pred_fallthru
      _
    %119 = vsyncpa [#allocation3], 1

</llo_original>
